<compile_context>
chip_gen: v7x
topology: tpu7x:2x2x1
jax: 0.10.0
libtpu: 0.0.40
codegen_flags: <defaults>
</compile_context>

<pallas_src>
import functools
import math

import numpy as np
import jax
import jax.numpy as jnp
from jax.experimental import pallas as pl
from jax.experimental.pallas import tpu as pltpu


@functools.lru_cache(maxsize=None)
def _inv_den_np(d_model: int) -> np.ndarray:
    """Per-column reciprocal denominator, built in float64 (torch math.* parity), cast to f32.

    inv_den[c] = 1/sin(10000^(2c/d))  for even c,
                 1/cos(10000^(2c/d))  for odd  c.
    """
    c = np.arange(d_model, dtype=np.float64)
    angle = np.power(10000.0, 2.0 * c / float(d_model))
    den = np.where(np.arange(d_model) % 2 == 0, np.sin(angle), np.cos(angle))
    return (1.0 / den).astype(np.float32).reshape(1, d_model)  # [1, D], ~4*D bytes


def _target_block_bytes() -> int:
    """Generation-aware per-block byte target (2 streams x 2 pipeline buffers must fit scoped VMEM)."""
    try:
        kind = jax.devices()[0].device_kind.lower()
    except Exception:  # pragma: no cover - defensive
        kind = ""
    # v5e: 16 MiB scoped-VMEM default -> ~2 MiB blocks (2 x 2 x 2 MiB = 8 MiB, safe).
    if "v5 lite" in kind or "v5e" in kind or "v5lite" in kind:
        return 2 * 1024 * 1024
    # v6e / v7x: 32 MiB scoped-VMEM default -> ~4 MiB blocks (2 x 2 x 4 MiB = 16 MiB, safe).
    return 4 * 1024 * 1024


def _pe_kernel(inv_den_ref, x_ref, o_ref, *, scale: float, ts: int):
    # inv_den_ref: [1, D];  x_ref / o_ref: [Bb, ts, D]
    s = pl.program_id(1)                                   # sequence-tile index
    d = x_ref.shape[-1]
    row = jax.lax.broadcasted_iota(jnp.int32, (ts, d), 0)  # [ts, D] row index within tile
    pos = (row + s * ts).astype(jnp.float32)               # absolute sequence position
    pe = pos * inv_den_ref[...]                            # [ts, D], computed ONCE per tile
    o_ref[...] = x_ref[...] * scale + pe[None, :, :]       # broadcast over Bb batch rows


def positional_encoder(
    x: jnp.ndarray,
    d_model: int,
    max_seq_len: int = 80,
    *,
    seq_block: int | None = None,
    batch_block: int | None = None,
) -> jnp.ndarray:
    """x: [B, S, D] float32.  Returns x * sqrt(d_model) + pe[:S] (broadcast over batch)."""
    B, S, D = x.shape
    assert D == d_model, "last dim of x must equal d_model"
    assert S <= max_seq_len, "sequence length exceeds max_seq_len"

    scale = math.sqrt(float(d_model))
    inv_den = jnp.asarray(_inv_den_np(d_model))            # [1, D], host-built + cached

    itemsize = jnp.dtype(x.dtype).itemsize
    row_bytes = D * itemsize
    target = _target_block_bytes()

    # --- sequence tile: full S unless a single [S, D] slab already exceeds the target ---
    if seq_block is not None:
        ts = min(int(seq_block), S)
    elif S * row_bytes > target:
        ts = max(8, ((target // row_bytes) // 8) * 8)
    else:
        ts = S
    if ts < S:
        assert ts % 8 == 0, "sequence block must be a multiple of 8 when tiling the sequence"

    # --- batch block: fill the byte target with whole [ts, D] slabs ---
    if batch_block is not None:
        bb = max(1, min(int(batch_block), B))
    else:
        tile_bytes = ts * row_bytes
        bb = max(1, min(B, target // max(1, tile_bytes)))
        # Keep >= 2 grid steps along the (parallel) batch axis so v7x's 2 TensorCores
        # both get work; v5e/v6e have a single TC so this costs nothing there.
        if B >= 2 and bb >= B:
            bb = (B + 1) // 2

    num_b = pl.cdiv(B, bb)   # partial last batch block handled by masked writes
    num_s = pl.cdiv(S, ts)   # partial last sequence block handled by masked writes

    kernel = functools.partial(_pe_kernel, scale=scale, ts=ts)

    return pl.pallas_call(
        kernel,
        out_shape=jax.ShapeDtypeStruct((B, S, D), x.dtype),
        grid_spec=pltpu.PrefetchScalarGridSpec(
            num_scalar_prefetch=0,
            grid=(num_b, num_s),
            in_specs=[
                pl.BlockSpec((1, D), lambda b, s: (0, 0)),          # inv_den: constant block
                pl.BlockSpec((bb, ts, D), lambda b, s: (b, s, 0)),  # x
            ],
            out_specs=pl.BlockSpec((bb, ts, D), lambda b, s: (b, s, 0)),
        ),
        # Output may reuse x's HBM buffer (x is input index 1 after inv_den).
        input_output_aliases={1: 0},
        compiler_params=pltpu.CompilerParams(
            dimension_semantics=("parallel", "parallel"),
        ),
    )(inv_den, x)


def _reference(x: jnp.ndarray, d_model: int) -> jnp.ndarray:
    """Plain-JAX reference mirroring the torch module (same f64-built, f32-cast denominator table)."""
    B, S, D = x.shape
    inv_den = jnp.asarray(_inv_den_np(d_model))                       # [1, D]
    pos = jnp.arange(S, dtype=jnp.float32)[:, None]                   # [S, 1]
    pe = pos * inv_den                                                # [S, D]
    return x * math.sqrt(float(d_model)) + pe[None, :, :]


if __name__ == "__main__":
    key = jax.random.PRNGKey(0)

    # --- case 1: small demo config (lane-dense d_model), batch split across >=2 grid steps ---
    batch, seq_len, d_model, max_seq_len = 2, 8, 128, 80
    x = jax.random.normal(key, (batch, seq_len, d_model), dtype=jnp.float32)
    out = jax.block_until_ready(positional_encoder(x, d_model, max_seq_len))
    ref = _reference(x, d_model)
    assert jnp.allclose(out, ref, rtol=1e-6, atol=1e-6), "mismatch vs reference (case 1)"

    # --- case 2: force sequence tiling with a partial last tile (S=20, ts=8 -> 3 seq steps) ---
    seq_len2 = 20
    x2 = jax.random.normal(jax.random.PRNGKey(1), (batch, seq_len2, d_model), dtype=jnp.float32)
    out2 = jax.block_until_ready(
        positional_encoder(x2, d_model, max_seq_len, seq_block=8)
    )
    ref2 = _reference(x2, d_model)
    assert jnp.allclose(out2, ref2, rtol=1e-6, atol=1e-6), "mismatch vs reference (case 2)"

    # --- case 3: partial BATCH block (B=3, Bb=2 -> 2 batch steps, last one half-full) ---
    x3 = jax.random.normal(jax.random.PRNGKey(2), (3, seq_len2, d_model), dtype=jnp.float32)
    out3 = jax.block_until_ready(
        positional_encoder(x3, d_model, max_seq_len, seq_block=8, batch_block=2)
    )
    ref3 = _reference(x3, d_model)
    assert jnp.allclose(out3, ref3, rtol=1e-6, atol=1e-6), "mismatch vs reference (case 3)"

    print("KERNEL_OK")
</pallas_src>

<mosaic_0001>
module attributes {stable_mosaic.version = 11 : i64} {
  func.func @_pe_kernel(%arg0: i32, %arg1: i32, %arg2: memref<1x128xf32, #tpu.memory_space<vmem>>, %arg3: memref<1x8x128xf32, #tpu.memory_space<vmem>>, %arg4: memref<1x8x128xf32, #tpu.memory_space<vmem>>) attributes {dimension_semantics = [#tpu.dimension_semantics<parallel>, #tpu.dimension_semantics<parallel>], iteration_bounds = array<i64: 2, 1>, scalar_prefetch = 0 : i64, scratch_operands = 0 : i64, tpu.core_type = #tpu.core_type<tc>, window_params = [{pipeline_mode = #tpu.pipeline_mode<synchronous>, transform_indices = @transform_0, window_bounds = array<i64: 1, 128>}, {transform_indices = @transform_1, window_bounds = array<i64: 1, 8, 128>}, {transform_indices = @transform_2, window_bounds = array<i64: 1, 8, 128>}]} {
    %0 = tpu.iota {dimensions = array<i32: 0>} : vector<8x128xi32>
    %c8_i32 = arith.constant 8 : i32
    %1 = arith.muli %arg1, %c8_i32 : i32
    %2 = vector.broadcast %1 : i32 to vector<8x128xi32>
    %3 = arith.addi %0, %2 : vector<8x128xi32>
    %4 = arith.sitofp %3 : vector<8x128xi32> to vector<8x128xf32>
    %c0 = arith.constant 0 : index
    %c0_0 = arith.constant 0 : index
    %5 = vector.load %arg2[%c0, %c0_0] : memref<1x128xf32, #tpu.memory_space<vmem>>, vector<1x128xf32>
    %6 = vector.broadcast %5 : vector<1x128xf32> to vector<8x128xf32>
    %7 = arith.mulf %4, %6 : vector<8x128xf32>
    %c0_1 = arith.constant 0 : index
    %c0_2 = arith.constant 0 : index
    %c0_3 = arith.constant 0 : index
    %8 = vector.load %arg3[%c0_1, %c0_2, %c0_3] : memref<1x8x128xf32, #tpu.memory_space<vmem>>, vector<1x8x128xf32>
    %cst = arith.constant 11.3137083 : f32
    %9 = vector.broadcast %cst : f32 to vector<1x8x128xf32>
    %10 = arith.mulf %8, %9 : vector<1x8x128xf32>
    %11 = vector.shape_cast %7 : vector<8x128xf32> to vector<1x8x128xf32>
    %12 = arith.addf %10, %11 : vector<1x8x128xf32>
    %c0_4 = arith.constant 0 : index
    %c0_5 = arith.constant 0 : index
    %c0_6 = arith.constant 0 : index
    %13 = vector.load %arg4[%c0_4, %c0_5, %c0_6] : memref<1x8x128xf32, #tpu.memory_space<vmem>>, vector<1x8x128xf32>
    tpu.vector_store %arg4[%c0_4, %c0_5, %c0_6], %12 {strides = array<i32>} : memref<1x8x128xf32, #tpu.memory_space<vmem>>, vector<1x8x128xf32>,
    return
  }
  func.func @transform_0(%arg0: i32, %arg1: i32) -> (i32, i32) {
    %c0_i32 = arith.constant 0 : i32
    %c0_i32_0 = arith.constant 0 : i32
    %c0_i32_1 = arith.constant 0 : i32
    return %c0_i32, %c0_i32_0 : i32, i32
  }
  func.func @transform_1(%arg0: i32, %arg1: i32) -> (i32, i32, i32) {
    %c0_i32 = arith.constant 0 : i32
    %c0_i32_0 = arith.constant 0 : i32
    return %arg0, %arg1, %c0_i32 : i32, i32, i32
  }
  func.func @transform_2(%arg0: i32, %arg1: i32) -> (i32, i32, i32) {
    %c0_i32 = arith.constant 0 : i32
    %c0_i32_0 = arith.constant 0 : i32
    return %arg0, %arg1, %c0_i32 : i32, i32, i32
  }
}

</mosaic_0001>

<llo_original>
// kernel: tpu_custom_call.1
$region0: #{tpu_custom_call.1}
  #allocation0 [shape = 'u32[]', space=smem, size = 0x4, offset = 0x4, fixed_abs, tag = 'smem constant byte address 0x4 - core index']
  #allocation1 [shape = 'u32[144,128]{1,0:T(1,128)}', space=vmem, size = 0x12000, scoped, tag = 'internal scratch']
  %s0 = inlined_call_operand.vmem [shape: f32[1,128], index: 0, kind: input, shape index: {}]
  %s1 = inlined_call_operand.hbm [shape: f32[2,8,128], index: 1, kind: input, shape index: {}, may-alias: {1,2}]
  %s2 = inlined_call_operand.hbm [shape: f32[2,8,128], index: 2, kind: output, shape index: {}, may-alias: {1,2}]
  %s3 = sld [smem:[#allocation0]]
  $region45: #{tpu_custom_call.1} parent=0
    _
  %s5 = ssub.s32 1, %s3
  %s6 = scalar_select 0, %s5, %s3
  $region1: #{tpu_custom_call.1} parent=0
    #allocation2 [shape = 'u8[8192]{0}', space=vmem, size = 0x2000, scoped, tag = 'input window, operand 1']
    #allocation3 [shape = 's32[2]{0}', space=sflag, size = 0x8, scoped, tag = 'scoped memory for tpu_custom_call.1']
    #allocation4 [shape = 's32[2]{0}', space=sflag, size = 0x8, scoped, tag = 'scoped memory for tpu_custom_call.1']
    #allocation5 [shape = 'u8[8192]{0}', space=vmem, size = 0x2000, scoped, tag = 'output window, operand 0']
    %7 = vsyncpa [#allocation3], 0
    %s8 = scalar_lea.sflag [#allocation3], 1
    %9 = vsyncpa %s8, 0
    %10 = vsyncpa [#allocation4], 0
    %s11 = scalar_lea.sflag [#allocation4], 1
    %12 = vsyncpa %s11, 0
    loop: start=0, step=1, limit=4
    $region2: #{tpu_custom_call.1} parent=1 // loop_pre_header
      _
    $region3: #{tpu_custom_call.1} parent=1 // loop_header
      %s14 = sphi 0, %s18
      %p15 = scmp.ge.s32.totalorder %s14, 4
      %s21 = sphi 0, %s33
      %s22 = sphi 0, %s29
      %s23 = sphi 0, %s21
      %s24 = sphi 0, %s22
      %s25 = sphi 0, %s23
      %s26 = sphi 0, %s24
      %s34 = sphi 0, %s34
      %s36 = sphi 0, %s34
      %s37 = sphi 0, %s36
      %s51 = sphi 0, %s37
      %s59 = sphi 0, %s61
      %s62 = sphi 0, %s59
      %s63 = sphi 0, %s62
      %s79 = sphi 0, %s63
      %s87 = sphi 0, %s89
      %s90 = sphi 0, %s87
      %s91 = sphi 0, %s90
      %s107 = sphi 0, %s91
    $region4: #{tpu_custom_call.1} parent=1 // loop_header_branch
      %17 = sbr.rel (%p15) target = $region8
    $region5: #{tpu_custom_call.1} parent=1 // loop_body
      %s19 = ssub.s32 %s14, 1
      %s20 = ssub.s32 %s14, 2
      %s27 = sadd.s32 1, %s22
      %p28 = scmp.ge.s32.totalorder %s27, 1
      %s29 = scalar_select %p28, 0, %s27
      %s30 = sadd.s32 1, %s21
      %s31 = scalar_select %p28, %s30, %s21
      %p32 = scmp.ge.s32.totalorder %s31, 2
      %s33 = scalar_select %p32, 0, %s31
      %s35 = sadd.s32 %s34, 1
      %p38 = scmp.eq.s32.totalorder %s14, 1
      %p39 = scmp.ne.s32.totalorder %s34, %s36
      %p40 = scmp.eq.s32.totalorder %s14, 0
      %p41 = por %p39, %p40
      %p42 = scmp.ne.s32.totalorder %s34, %s36
      %p43 = scmp.eq.s32.totalorder %s19, 1
      %p44 = por %p42, %p43
      %p45 = scmp.ne.s32.totalorder %s36, %s37
      %p46 = scmp.eq.s32.totalorder %s19, 0
      %p47 = por %p45, %p46
      %p48 = scmp.ne.s32.totalorder %s36, %s37
      %p49 = scmp.eq.s32.totalorder %s20, 1
      %p50 = por %p48, %p49
      %p52 = scmp.ne.s32.totalorder %s37, %s51
      %p53 = scmp.eq.s32.totalorder %s20, 0
      %p54 = por %p52, %p53
      %s55 = ssub.s32 %s21, %s33
      %s56 = ssub.s32 %s22, %s29
      %s57 = sor.u32 %s55, %s56
      %p58 = scmp.eq.s32.totalorder %s57, 0
      %s60 = sadd.s32 %s59, 1
      %s61 = scalar_select %p58, %s59, %s60
      %p64 = pneg %p58
      %p65 = scmp.eq.s32.totalorder %s14, 1
      %p66 = por %p64, %p65
      %p67 = scmp.ne.s32.totalorder %s59, %s62
      %p68 = scmp.eq.s32.totalorder %s14, 0
      %p69 = por %p67, %p68
      %p70 = scmp.ne.s32.totalorder %s59, %s62
      %p71 = scmp.eq.s32.totalorder %s19, 1
      %p72 = por %p70, %p71
      %p73 = scmp.ne.s32.totalorder %s62, %s63
      %p74 = scmp.eq.s32.totalorder %s19, 0
      %p75 = por %p73, %p74
      %p76 = scmp.ne.s32.totalorder %s62, %s63
      %p77 = scmp.eq.s32.totalorder %s20, 1
      %p78 = por %p76, %p77
      %p80 = scmp.ne.s32.totalorder %s63, %s79
      %p81 = scmp.eq.s32.totalorder %s20, 0
      %p82 = por %p80, %p81
      %s83 = ssub.s32 %s21, %s33
      %s84 = ssub.s32 %s22, %s29
      %s85 = sor.u32 %s83, %s84
      %p86 = scmp.eq.s32.totalorder %s85, 0
      %s88 = sadd.s32 %s87, 1
      %s89 = scalar_select %p86, %s87, %s88
      %p92 = pneg %p86
      %p93 = scmp.eq.s32.totalorder %s14, 1
      %p94 = por %p92, %p93
      %p95 = scmp.ne.s32.totalorder %s87, %s90
      %p96 = scmp.eq.s32.totalorder %s14, 0
      %p97 = por %p95, %p96
      %p98 = scmp.ne.s32.totalorder %s87, %s90
      %p99 = scmp.eq.s32.totalorder %s19, 1
      %p100 = por %p98, %p99
      %p101 = scmp.ne.s32.totalorder %s90, %s91
      %p102 = scmp.eq.s32.totalorder %s19, 0
      %p103 = por %p101, %p102
      %p104 = scmp.ne.s32.totalorder %s90, %s91
      %p105 = scmp.eq.s32.totalorder %s20, 1
      %p106 = por %p104, %p105
      %p108 = scmp.ne.s32.totalorder %s91, %s107
      %p109 = scmp.eq.s32.totalorder %s20, 0
      %p110 = por %p108, %p109
      %p111 = scmp.le.s32.totalorder 1, %s14
      %p112 = scmp.lt.s32.totalorder %s14, 3
      %p113 = pnand %p111, %p112
      %p114 = pneg %p113
      // Predicated region
      $region9: #{tpu_custom_call.1} parent=5 // pred_check
        _
      $region10: #{tpu_custom_call.1} parent=5 // pred_check_branch
        %116 = sbr.rel (%p113) target = $region12
      $region11: #{tpu_custom_call.1} parent=5 // pred_region
        %s117 = ssub.s32 %s14, 1
        // Predicated region
        $region13: #{tpu_custom_call.1} parent=11 // pred_check
          %p118 = pneg %p47
        $region14: #{tpu_custom_call.1} parent=11 // pred_check_branch
          %120 = sbr.rel (%p118) target = $region16
        $region15: #{tpu_custom_call.1} parent=11 // pred_region
          _
        $region16: #{tpu_custom_call.1} parent=11 // pred_fallthru
          _
      $region12: #{tpu_custom_call.1} parent=5 // pred_fallthru
        _
      %p121 = scmp.lt.s32.totalorder %s14, 2
      // Predicated region
      $region17: #{tpu_custom_call.1} parent=5 // pred_check
        %p122 = pneg %p121
      $region18: #{tpu_custom_call.1} parent=5 // pred_check_branch
        %124 = sbr.rel (%p122) target = $region20
      $region19: #{tpu_custom_call.1} parent=5 // pred_region
        // Predicated region
        $region21: #{tpu_custom_call.1} parent=19 // pred_check
          %p125 = pneg %p69
        $region22: #{tpu_custom_call.1} parent=19 // pred_check_branch
          %127 = sbr.rel (%p125) target = $region24
        $region23: #{tpu_custom_call.1} parent=19 // pred_region
          %s128 = sand.u32 %s59, 1
          %s129 = scalar_lea.sflag [#allocation3], %s128
          %s130 = sand.u32 %s59, 1
          %s131 = smul.addr %s130, 8
          %s132 = scalar_lea.vmem [#allocation2], %s131
          %s134 = ssub.s32 128, 128
          %135 = vsyncadd %s129, %s134
          %s136 = sadd.s32 %s22, %s21
          %s137 = smul.addr %s136, 128
          %s138 = scalar_lea.hbm %s1, %s137
          %s140 = sshll.u32 %s132, 4
          %s141 = int_to_ptr.vmem [resolvable:$true] %s140
          %143 = dma.hbm_to_vmem [thread:$0]  %s138, 128, %s141, %s129
        $region24: #{tpu_custom_call.1} parent=19 // pred_fallthru
          _
      $region20: #{tpu_custom_call.1} parent=5 // pred_fallthru
        _
      %p144 = scmp.le.s32.totalorder 1, %s14
      %p145 = scmp.lt.s32.totalorder %s14, 3
      %p146 = pnand %p144, %p145
      %p147 = pneg %p146
      // Predicated region
      $region25: #{tpu_custom_call.1} parent=5 // pred_check
        _
      $region26: #{tpu_custom_call.1} parent=5 // pred_check_branch
        %149 = sbr.rel (%p146) target = $region28
      $region27: #{tpu_custom_call.1} parent=5 // pred_region
        %s150 = ssub.s32 %s14, 1
        %s151 = sand.u32 %s62, 1
        %s152 = scalar_lea.sflag [#allocation3], %s151
        %s153 = sand.u32 %s62, 1
        %s154 = smul.addr %s153, 8
        %s155 = scalar_lea.vmem [#allocation2], %s154
        // Predicated region
        $region29: #{tpu_custom_call.1} parent=27 // pred_check
          %p156 = pneg %p75
        $region30: #{tpu_custom_call.1} parent=27 // pred_check_branch
          %158 = sbr.rel (%p156) target = $region32
        $region31: #{tpu_custom_call.1} parent=27 // pred_region
          %159 = dma.done %s152, 128
        $region32: #{tpu_custom_call.1} parent=27 // pred_fallthru
          _
        %p160 = pneg %p47
        %p161 = pneg %p44
        %s162 = sand.u32 %s62, 1
        %s163 = scalar_lea.sflag [#allocation3], %s162
        %s164 = sand.u32 %s62, 1
        %s165 = smul.addr %s164, 8
        %s166 = scalar_lea.vmem [#allocation2], %s165
        %p167 = pneg %p75
        %p168 = pneg %p72
        %p169 = pneg %p103
        %p170 = pneg %p100
        %s171 = sand.u32 %s90, 1
        %s172 = scalar_lea.sflag [#allocation4], %s171
        %s173 = sand.u32 %s90, 1
        %s174 = smul.addr %s173, 8
        %s175 = scalar_lea.vmem [#allocation5], %s174
        %v176 = vlaneseq
        %v177 = vshrl.u32 %v176, 7
        %s178 = smul.u32 %s24, 8
        %v179 = vstv %s178
        %v180 = vadd.s32 %v177, %v179
        %v181 = vcvt.s32.f32 %v180
        %v182 = vld [vmem:[%s0] sm:$0x1]
        %v184 = vlaneseq
        %v185 = vshrl.u32 %v184, 7
        %v186 = vsub.s32 0, %v185
        %v187 = vrot.slane %v182, %v186
        %v189 = vmul.f32 %v181, %v187
        %v190 = vld [vmem:[%s155] sm:$0xff]
        %v191 = vmul.f32 %v190, 11.313708
        %v192 = vadd.f32 %v191, %v189
        %193 = vst [vmem:[%s175] sm:$0xff] %v192
        %s194 = sand.u32 %s90, 1
        %s195 = scalar_lea.sflag [#allocation4], %s194
        %s196 = sand.u32 %s90, 1
        %s197 = smul.addr %s196, 8
        %s198 = scalar_lea.vmem [#allocation5], %s197
        // Predicated region
        $region33: #{tpu_custom_call.1} parent=27 // pred_check
          %p199 = pneg %p100
        $region34: #{tpu_custom_call.1} parent=27 // pred_check_branch
          %201 = sbr.rel (%p199) target = $region36
        $region35: #{tpu_custom_call.1} parent=27 // pred_region
          %s203 = ssub.s32 128, 128
          %204 = vsyncadd %s195, %s203
          %s205 = sadd.s32 %s24, %s23
          %s206 = smul.addr %s205, 128
          %s207 = scalar_lea.hbm %s2, %s206
          %s209 = sshll.u32 %s198, 4
          %s210 = int_to_ptr.vmem [resolvable:$true] %s209
          %212 = dma.vmem_to_hbm [thread:$0]  %s210, 128, %s207, %s195
        $region36: #{tpu_custom_call.1} parent=27 // pred_fallthru
          _
      $region28: #{tpu_custom_call.1} parent=5 // pred_fallthru
        _
      %p213 = scmp.le.s32.totalorder 2, %s14
      // Predicated region
      $region37: #{tpu_custom_call.1} parent=5 // pred_check
        %p214 = pneg %p213
      $region38: #{tpu_custom_call.1} parent=5 // pred_check_branch
        %216 = sbr.rel (%p214) target = $region40
      $region39: #{tpu_custom_call.1} parent=5 // pred_region
        %s217 = ssub.s32 %s14, 2
        // Predicated region
        $region41: #{tpu_custom_call.1} parent=39 // pred_check
          %p218 = pneg %p106
        $region42: #{tpu_custom_call.1} parent=39 // pred_check_branch
          %220 = sbr.rel (%p218) target = $region44
        $region43: #{tpu_custom_call.1} parent=39 // pred_region
          %s221 = sand.u32 %s91, 1
          %s222 = scalar_lea.sflag [#allocation4], %s221
          %s223 = sand.u32 %s91, 1
          %s224 = smul.addr %s223, 8
          %s225 = scalar_lea.vmem [#allocation5], %s224
          %226 = dma.done %s222, 128
        $region44: #{tpu_custom_call.1} parent=39 // pred_fallthru
          _
      $region40: #{tpu_custom_call.1} parent=5 // pred_fallthru
        _
    $region6: #{tpu_custom_call.1} parent=1 // loop_footer
      %s18 = sadd.s32 1, %s14
    $region7: #{tpu_custom_call.1} parent=1 // loop_footer_branch
      %13 = sbr.rel target = $region3
    $region8: #{tpu_custom_call.1} parent=1 // loop_exit
      _
    %227 = vsyncpa [#allocation3], 1
    %s228 = scalar_lea.sflag [#allocation3], 1
    %229 = vsyncpa %s228, 1
    %230 = vsyncpa [#allocation4], 1
    %s231 = scalar_lea.sflag [#allocation4], 1
    %232 = vsyncpa %s231, 1

</llo_original>
